<compile_context>
chip_gen: v6e
topology: v6e:2x2x1
jax: 0.10.0
libtpu: 0.0.40
codegen_flags: <defaults>
</compile_context>

<pallas_src>
import jax
import jax.numpy as jnp
from jax.experimental import pallas as pl
from jax.experimental.pallas import tpu as pltpu


def _round_up(x, m):
    return ((x + m - 1) // m) * m


def _sublane_align(dtype):
    # f32 -> 8 rows, bf16/f16 -> 16, 8-bit -> 32 (packed sublane tiles).
    return max(8, 32 // jnp.dtype(dtype).itemsize)


def _vmem_budget_bytes():
    try:
        cap = int(pltpu.get_tpu_info().vmem_capacity_bytes)
    except Exception:
        cap = 64 * 2**20  # conservative (v7x) fallback
    # ~12.5% headroom for Mosaic internals; cap large parts at ~104 MiB.
    return min(int(cap * 0.875), 104 * 2**20)


def ffn_kernel(x_ref, w1_ref, b1_ref, w2_ref, b2_ref, o_ref, acc_ref):
    k = pl.program_id(1)

    @pl.when(k == 0)
    def _init():
        acc_ref[...] = jnp.zeros_like(acc_ref)

    # First linear, one H-chunk: (tm, F) @ (F, tk) -> f32 (tm, tk) on the MXU.
    # Computed exactly once per (row tile, H chunk) -- no output-column loop.
    h = jnp.dot(x_ref[...], w1_ref[...], preferred_element_type=jnp.float32)
    # b1 + ReLU applied per H-chunk BEFORE the accumulation over H.
    h = jnp.maximum(h + b1_ref[...], 0.0)
    # Second linear, full output width, accumulated over H chunks in f32 VMEM.
    acc_ref[...] += jnp.dot(h.astype(w2_ref.dtype), w2_ref[...],
                            preferred_element_type=jnp.float32)

    # Output bias added exactly once, on the last H-chunk.
    @pl.when(k == pl.num_programs(1) - 1)
    def _finalize():
        o_ref[...] = (acc_ref[...] + b2_ref[...]).astype(o_ref.dtype)


def prepare_ffn_params(w1, b1, w2, b2, *, tk=512, compute_dtype=None):
    """Pad / cast the weights ONCE (hoisted out of the per-call path).

    w1: (F, H); b1: (H,); w2: (H, D); b2: (D,).  H is padded to a multiple of
    the chosen tk (padded columns give ReLU(0+0)=0 and contribute nothing),
    D is padded to a multiple of 128 so every output store is a full lane-
    dense vst.
    """
    F, H = w1.shape
    D = w2.shape[1]
    tk = max(128, min(_round_up(tk, 128), _round_up(H, 128)))
    Hp = _round_up(H, tk)
    Dp = _round_up(D, 128)

    if compute_dtype is not None:
        w1 = w1.astype(compute_dtype)
        w2 = w2.astype(compute_dtype)

    w1p = jnp.pad(w1, ((0, 0), (0, Hp - H)))
    b1p = jnp.pad(b1.astype(jnp.float32), (0, Hp - H)).reshape(1, Hp)
    w2p = jnp.pad(w2, ((0, Hp - H), (0, Dp - D)))
    b2p = jnp.pad(b2.astype(jnp.float32), (0, Dp - D)).reshape(1, Dp)

    return dict(w1=w1p, b1=b1p, w2=w2p, b2=b2p,
                F=F, H=H, D=D, Hp=Hp, Dp=Dp, tk=tk,
                compute_dtype=compute_dtype)


def feed_forward_prepared(x, params, *, tm=512, w1_buffers=2):
    """x: (B, S, F) -> (B, S, D), using pre-padded weights from prepare_ffn_params."""
    B, S, F = x.shape
    assert F == params["F"], "feature dim mismatch"
    D, Hp, Dp, tk = params["D"], params["Hp"], params["Dp"], params["tk"]
    cd = params["compute_dtype"]
    out_dtype = x.dtype

    if cd is not None:
        x = x.astype(cd)
    in_dtype = x.dtype
    in_size = jnp.dtype(in_dtype).itemsize
    out_size = jnp.dtype(out_dtype).itemsize

    M = B * S
    align = _sublane_align(in_dtype)
    tm = max(align, min(_round_up(tm, align), _round_up(M, align)))
    Mp = _round_up(M, tm)
    gm = Mp // tm

    # v7x has 2 TensorCores: if the whole batch fits one row tile but is large
    # enough to split, halve the tile so the "parallel" M axis feeds both TCs.
    if gm == 1 and M >= 256:
        tm = _round_up(-(-M // 2), align)
        Mp = _round_up(M, tm)
        gm = Mp // tm

    # VMEM footprint (double-buffered blocks + f32 accumulator + f32 h
    # intermediate and its cast copy + internal-scratch margin); shrink tm
    # until it fits the per-chip budget.
    budget = _vmem_budget_bytes()

    def est_bytes(tm_):
        return (2 * in_size * tm_ * F                      # x
                + w1_buffers * in_size * F * tk            # W1 slab
                + 2 * in_size * tk * Dp                    # W2 slab
                + 2 * 4 * (tk + Dp)                        # b1, b2
                + 2 * out_size * tm_ * Dp                  # output tile
                + 4 * tm_ * Dp                             # f32 accumulator
                + (4 + in_size) * tm_ * tk                 # h (f32 + cast copy)
                + (2 << 20))                               # Mosaic internal scratch

    while est_bytes(tm) > budget and tm > align:
        tm = max(align, _round_up(tm // 2, align))
    Mp = _round_up(M, tm)
    gm = Mp // tm
    gk = Hp // tk

    x2d = jnp.pad(x.reshape(M, F), ((0, Mp - M), (0, 0)))
    w1p, b1p, w2p, b2p = params["w1"], params["b1"], params["w2"], params["b2"]

    vmem_limit = int(min(budget, max(32 * 2**20, int(1.25 * est_bytes(tm)))))

    cost = pl.CostEstimate(
        flops=int(2 * Mp * F * Hp + 2 * Mp * Hp * Dp),
        transcendentals=0,
        bytes_accessed=int(x2d.nbytes + gm * (w1p.nbytes + w2p.nbytes)
                           + b1p.nbytes + b2p.nbytes + Mp * Dp * out_size),
    )

    w1_spec_kwargs = {}
    if w1_buffers != 2:
        w1_spec_kwargs["pipeline_mode"] = pl.Buffered(w1_buffers)

    out2d = pl.pallas_call(
        ffn_kernel,
        out_shape=jax.ShapeDtypeStruct((Mp, Dp), out_dtype),
        grid_spec=pltpu.PrefetchScalarGridSpec(
            num_scalar_prefetch=0,
            grid=(gm, gk),                                   # k = H reduction, innermost
            in_specs=[
                pl.BlockSpec((tm, F), lambda i, k: (i, 0)),              # x row tile
                pl.BlockSpec((F, tk), lambda i, k: (0, k), **w1_spec_kwargs),  # W1 H-chunk
                pl.BlockSpec((1, tk), lambda i, k: (0, k)),              # b1 H-chunk
                pl.BlockSpec((tk, Dp), lambda i, k: (k, 0)),             # W2 H-chunk (full D)
                pl.BlockSpec((1, Dp), lambda i, k: (0, 0)),              # b2
            ],
            out_specs=pl.BlockSpec((tm, Dp), lambda i, k: (i, 0)),
            scratch_shapes=[pltpu.VMEM((tm, Dp), jnp.float32)],
        ),
        compiler_params=pltpu.CompilerParams(
            dimension_semantics=("parallel", "arbitrary"),
            vmem_limit_bytes=vmem_limit,
        ),
        cost_estimate=cost,
    )(x2d, w1p, b1p, w2p, b2p)

    return out2d[:M, :D].reshape(B, S, D)


def feed_forward(x, w1, b1, w2, b2, *, tm=512, tk=512, compute_dtype=None,
                 w1_buffers=2):
    """Convenience wrapper.  NOTE: pads/casts the weights on every call; for
    repeated use, call prepare_ffn_params once and feed_forward_prepared."""
    params = prepare_ffn_params(w1, b1, w2, b2, tk=tk, compute_dtype=compute_dtype)
    return feed_forward_prepared(x, params, tm=tm, w1_buffers=w1_buffers)


def _ref_ffn(x, w1, b1, w2, b2):
    return jnp.maximum(x @ w1 + b1, 0.0) @ w2 + b2


if __name__ == "__main__":
    # Module hyperparameters: FeedForward(d, f) -> hidden = 4*f.
    d_model = 32
    f = 32
    batch, seq = 2, 8

    key = jax.random.PRNGKey(0)
    kx, k1, k2, k3, k4, kx2, k5, k6, k7, k8 = jax.random.split(key, 10)

    # PyTorch-Linear-style uniform init bounds, stored as (in, out) so the
    # kernel computes x @ W (== x @ W^T for PyTorch's (out, in) storage).
    bound1 = 1.0 / (f ** 0.5)
    bound2 = 1.0 / ((4 * f) ** 0.5)
    w1 = jax.random.uniform(k1, (f, 4 * f), jnp.float32, -bound1, bound1)
    b1 = jax.random.uniform(k2, (4 * f,), jnp.float32, -bound1, bound1)
    w2 = jax.random.uniform(k3, (4 * f, d_model), jnp.float32, -bound2, bound2)
    b2 = jax.random.uniform(k4, (d_model,), jnp.float32, -bound2, bound2)
    x = jax.random.normal(kx, (batch, seq, f), jnp.float32)

    ref = _ref_ffn(x, w1, b1, w2, b2)

    # 1) f32 path with hoisted weight prep (toy shapes; D padded to 128
    #    internally so stores are lane-dense).
    params = prepare_ffn_params(w1, b1, w2, b2)
    out = jax.block_until_ready(feed_forward_prepared(x, params))
    assert out.shape == (batch, seq, d_model)
    assert jnp.allclose(out, ref, atol=1e-4, rtol=1e-4)

    # 2) bf16 MXU operands (recommended default on v6e/v7x), f32 accumulation.
    params_bf16 = prepare_ffn_params(w1, b1, w2, b2, compute_dtype=jnp.bfloat16)
    out_bf16 = jax.block_until_ready(feed_forward_prepared(x, params_bf16))
    assert jnp.allclose(out_bf16, ref, atol=5e-2, rtol=5e-2)

    # 3) Exercise the real tiling paths: multiple M row tiles, H-reduction
    #    over two chunks, and D padding (d=40 not a multiple of 128).
    f2, d2, b_, s_ = 64, 40, 2, 24
    bo1 = 1.0 / (f2 ** 0.5)
    bo2 = 1.0 / ((4 * f2) ** 0.5)
    w1b = jax.random.uniform(k5, (f2, 4 * f2), jnp.float32, -bo1, bo1)
    b1b = jax.random.uniform(k6, (4 * f2,), jnp.float32, -bo1, bo1)
    w2b = jax.random.uniform(k7, (4 * f2, d2), jnp.float32, -bo2, bo2)
    b2b = jax.random.uniform(k8, (d2,), jnp.float32, -bo2, bo2)
    xb = jax.random.normal(kx2, (b_, s_, f2), jnp.float32)
    out_b = jax.block_until_ready(
        feed_forward(xb, w1b, b1b, w2b, b2b, tm=16, tk=128))
    ref_b = _ref_ffn(xb, w1b, b1b, w2b, b2b)
    assert out_b.shape == (b_, s_, d2)
    assert jnp.allclose(out_b, ref_b, atol=1e-4, rtol=1e-4)

    print("KERNEL_OK")
</pallas_src>

<mosaic_0001>
module attributes {stable_mosaic.version = 11 : i64} {
  func.func @ffn_kernel(%arg0: i32, %arg1: i32, %arg2: memref<16x32xf32, #tpu.memory_space<vmem>>, %arg3: memref<32x128xf32, #tpu.memory_space<vmem>>, %arg4: memref<1x128xf32, #tpu.memory_space<vmem>>, %arg5: memref<128x128xf32, #tpu.memory_space<vmem>>, %arg6: memref<1x128xf32, #tpu.memory_space<vmem>>, %arg7: memref<16x128xf32, #tpu.memory_space<vmem>>, %arg8: memref<16x128xf32, #tpu.memory_space<vmem>>) attributes {dimension_semantics = [#tpu.dimension_semantics<parallel>, #tpu.dimension_semantics<arbitrary>], iteration_bounds = array<i64: 1, 1>, scalar_prefetch = 0 : i64, scratch_operands = 1 : i64, tpu.core_type = #tpu.core_type<tc>, window_params = [{transform_indices = @transform_0, window_bounds = array<i64: 16, 32>}, {transform_indices = @transform_1, window_bounds = array<i64: 32, 128>}, {transform_indices = @transform_2, window_bounds = array<i64: 1, 128>}, {transform_indices = @transform_3, window_bounds = array<i64: 128, 128>}, {pipeline_mode = #tpu.pipeline_mode<synchronous>, transform_indices = @transform_4, window_bounds = array<i64: 1, 128>}, {transform_indices = @transform_5, window_bounds = array<i64: 16, 128>}]} {
    %c0_i32 = arith.constant 0 : i32
    %0 = arith.cmpi eq, %arg1, %c0_i32 : i32
    %1 = arith.extui %0 : i1 to i32
    %c0_i32_0 = arith.constant 0 : i32
    %2 = arith.cmpi ne, %1, %c0_i32_0 : i32
    scf.if %2 {
      %cst_16 = arith.constant 0.000000e+00 : f32
      %19 = vector.broadcast %cst_16 : f32 to vector<16x128xf32>
      %c0_17 = arith.constant 0 : index
      %c0_18 = arith.constant 0 : index
      %20 = vector.load %arg8[%c0_17, %c0_18] : memref<16x128xf32, #tpu.memory_space<vmem>>, vector<16x128xf32>
      tpu.vector_store %arg8[%c0_17, %c0_18], %19 {strides = array<i32>} : memref<16x128xf32, #tpu.memory_space<vmem>>, vector<16x128xf32>,
    } else {
    }
    %c0 = arith.constant 0 : index
    %c0_1 = arith.constant 0 : index
    %3 = vector.load %arg2[%c0, %c0_1] : memref<16x32xf32, #tpu.memory_space<vmem>>, vector<16x32xf32>
    %c0_2 = arith.constant 0 : index
    %c0_3 = arith.constant 0 : index
    %4 = vector.load %arg3[%c0_2, %c0_3] : memref<32x128xf32, #tpu.memory_space<vmem>>, vector<32x128xf32>
    %cst = arith.constant dense<0.000000e+00> : vector<16x128xf32>
    %5 = tpu.matmul %3, %4, %cst {dimension_numbers = #tpu.dot_dimension_numbers<[1], [0], [0], [1], [0, 0, 1, 1], [], []>} : vector<16x32xf32>, vector<32x128xf32>, vector<16x128xf32> -> vector<16x128xf32>
    %c0_4 = arith.constant 0 : index
    %c0_5 = arith.constant 0 : index
    %6 = vector.load %arg4[%c0_4, %c0_5] : memref<1x128xf32, #tpu.memory_space<vmem>>, vector<1x128xf32>
    %7 = vector.broadcast %6 : vector<1x128xf32> to vector<16x128xf32>
    %8 = arith.addf %5, %7 : vector<16x128xf32>
    %cst_6 = arith.constant 0.000000e+00 : f32
    %9 = vector.broadcast %cst_6 : f32 to vector<16x128xf32>
    %10 = arith.maximumf %8, %9 : vector<16x128xf32>
    %c0_7 = arith.constant 0 : index
    %c0_8 = arith.constant 0 : index
    %11 = vector.load %arg8[%c0_7, %c0_8] : memref<16x128xf32, #tpu.memory_space<vmem>>, vector<16x128xf32>
    %c0_9 = arith.constant 0 : index
    %c0_10 = arith.constant 0 : index
    %12 = vector.load %arg5[%c0_9, %c0_10] : memref<128x128xf32, #tpu.memory_space<vmem>>, vector<128x128xf32>
    %cst_11 = arith.constant dense<0.000000e+00> : vector<16x128xf32>
    %13 = tpu.matmul %10, %12, %cst_11 {dimension_numbers = #tpu.dot_dimension_numbers<[1], [0], [0], [1], [0, 0, 1, 1], [], []>} : vector<16x128xf32>, vector<128x128xf32>, vector<16x128xf32> -> vector<16x128xf32>
    %14 = arith.addf %11, %13 : vector<16x128xf32>
    %c0_12 = arith.constant 0 : index
    %c0_13 = arith.constant 0 : index
    %15 = vector.load %arg8[%c0_12, %c0_13] : memref<16x128xf32, #tpu.memory_space<vmem>>, vector<16x128xf32>
    tpu.vector_store %arg8[%c0_12, %c0_13], %14 {strides = array<i32>} : memref<16x128xf32, #tpu.memory_space<vmem>>, vector<16x128xf32>,
    %c0_i32_14 = arith.constant 0 : i32
    %16 = arith.cmpi eq, %arg1, %c0_i32_14 : i32
    %17 = arith.extui %16 : i1 to i32
    %c0_i32_15 = arith.constant 0 : i32
    %18 = arith.cmpi ne, %17, %c0_i32_15 : i32
    scf.if %18 {
      %c0_16 = arith.constant 0 : index
      %c0_17 = arith.constant 0 : index
      %19 = vector.load %arg8[%c0_16, %c0_17] : memref<16x128xf32, #tpu.memory_space<vmem>>, vector<16x128xf32>
      %c0_18 = arith.constant 0 : index
      %c0_19 = arith.constant 0 : index
      %20 = vector.load %arg6[%c0_18, %c0_19] : memref<1x128xf32, #tpu.memory_space<vmem>>, vector<1x128xf32>
      %21 = vector.broadcast %20 : vector<1x128xf32> to vector<16x128xf32>
      %22 = arith.addf %19, %21 : vector<16x128xf32>
      %c0_20 = arith.constant 0 : index
      %c0_21 = arith.constant 0 : index
      %23 = vector.load %arg7[%c0_20, %c0_21] : memref<16x128xf32, #tpu.memory_space<vmem>>, vector<16x128xf32>
      tpu.vector_store %arg7[%c0_20, %c0_21], %22 {strides = array<i32>} : memref<16x128xf32, #tpu.memory_space<vmem>>, vector<16x128xf32>,
    } else {
    }
    return
  }
  func.func @transform_0(%arg0: i32, %arg1: i32) -> (i32, i32) {
    %c0_i32 = arith.constant 0 : i32
    %c0_i32_0 = arith.constant 0 : i32
    return %arg0, %c0_i32 : i32, i32
  }
  func.func @transform_1(%arg0: i32, %arg1: i32) -> (i32, i32) {
    %c0_i32 = arith.constant 0 : i32
    %c0_i32_0 = arith.constant 0 : i32
    return %c0_i32, %arg1 : i32, i32
  }
  func.func @transform_2(%arg0: i32, %arg1: i32) -> (i32, i32) {
    %c0_i32 = arith.constant 0 : i32
    %c0_i32_0 = arith.constant 0 : i32
    return %c0_i32, %arg1 : i32, i32
  }
  func.func @transform_3(%arg0: i32, %arg1: i32) -> (i32, i32) {
    %c0_i32 = arith.constant 0 : i32
    %c0_i32_0 = arith.constant 0 : i32
    return %arg1, %c0_i32 : i32, i32
  }
  func.func @transform_4(%arg0: i32, %arg1: i32) -> (i32, i32) {
    %c0_i32 = arith.constant 0 : i32
    %c0_i32_0 = arith.constant 0 : i32
    %c0_i32_1 = arith.constant 0 : i32
    return %c0_i32, %c0_i32_0 : i32, i32
  }
  func.func @transform_5(%arg0: i32, %arg1: i32) -> (i32, i32) {
    %c0_i32 = arith.constant 0 : i32
    %c0_i32_0 = arith.constant 0 : i32
    return %arg0, %c0_i32 : i32, i32
  }
}

</mosaic_0001>

<llo_original>
// kernel: tpu_custom_call.1
$region0: #{tpu_custom_call.1}
  #allocation0 [shape = 'u32[]', space=smem, size = 0x4, offset = 0x4, fixed_abs, tag = 'smem constant byte address 0x4 - core index']
  #allocation1 [shape = 'u32[144,128]{1,0:T(1,128)}', space=vmem, size = 0x12000, scoped, tag = 'internal scratch']
  #allocation2 [shape = 'f32[16,128]{1,0:T(8,128)}', space=vmem, size = 0x2000, scoped, tag = 'scratch operand']
  %s0 = inlined_call_operand.hbm [shape: f32[16,32], index: 0, kind: input, shape index: {}]
  %s1 = inlined_call_operand.hbm [shape: f32[32,128], index: 1, kind: input, shape index: {}]
  %s2 = inlined_call_operand.vmem [shape: f32[1,128], index: 2, kind: input, shape index: {}]
  %s3 = inlined_call_operand.hbm [shape: f32[128,128], index: 3, kind: input, shape index: {}]
  %s4 = inlined_call_operand.vmem [shape: f32[1,128], index: 4, kind: input, shape index: {}]
  %s5 = inlined_call_operand.hbm [shape: f32[16,128], index: 5, kind: output, shape index: {}]
  %s6 = sld [smem:[#allocation0]]
  $region50: #{tpu_custom_call.1} parent=0
    _
  %s8 = ssub.s32 1, %s6
  %s9 = scalar_select 0, %s8, %s6
  $region1: #{tpu_custom_call.1} parent=0
    #allocation3 [shape = 'u8[8192]{0}', space=vmem, size = 0x2000, scoped, tag = 'input window, operand 0, single buffered']
    #allocation4 [shape = 's32[1]{0}', space=sflag, size = 0x4, scoped, tag = 'scoped memory for tpu_custom_call.1']
    #allocation5 [shape = 's32[1]{0}', space=sflag, size = 0x4, scoped, tag = 'scoped memory for tpu_custom_call.1']
    #allocation6 [shape = 'u8[16384]{0}', space=vmem, size = 0x4000, scoped, tag = 'input window, operand 1, single buffered']
    #allocation7 [shape = 's32[1]{0}', space=sflag, size = 0x4, scoped, tag = 'scoped memory for tpu_custom_call.1']
    #allocation8 [shape = 'u8[65536]{0}', space=vmem, size = 0x10000, scoped, tag = 'input window, operand 3, single buffered']
    #allocation9 [shape = 'u8[8192]{0}', space=vmem, size = 0x2000, scoped, tag = 'output window, operand 0, single buffered']
    %10 = vsyncpa [#allocation4], 0
    %11 = vsyncpa [#allocation7], 0
    %12 = vsyncpa [#allocation5], 0
    // Predicated region
    $region2: #{tpu_custom_call.1} parent=1 // pred_check
      _
    $region3: #{tpu_custom_call.1} parent=1 // pred_check_branch
      %14 = sbr.rel (0) target = $region5
    $region4: #{tpu_custom_call.1} parent=1 // pred_region
      %s16 = ssub.s32 256, 256
      %17 = vsyncadd [#allocation4], %s16
      %s18 = sshll.u32 [#allocation3], 4
      %s19 = int_to_ptr.vmem [resolvable:$true] %s18
      %24 = dma.hbm_to_vmem [thread:$0]  %s0, 256, %s19, [#allocation4], 128, 128, 8
    $region5: #{tpu_custom_call.1} parent=1 // pred_fallthru
      _
    // Predicated region
    $region6: #{tpu_custom_call.1} parent=1 // pred_check
      _
    $region7: #{tpu_custom_call.1} parent=1 // pred_check_branch
      %26 = sbr.rel (0) target = $region9
    $region8: #{tpu_custom_call.1} parent=1 // pred_region
      %s28 = ssub.s32 512, 512
      %29 = vsyncadd [#allocation7], %s28
      %s30 = sshll.u32 [#allocation6], 4
      %s31 = int_to_ptr.vmem [resolvable:$true] %s30
      %36 = dma.hbm_to_vmem [thread:$0]  %s1, 512, %s31, [#allocation7], 128, 128, 8
    $region9: #{tpu_custom_call.1} parent=1 // pred_fallthru
      _
    // Predicated region
    $region10: #{tpu_custom_call.1} parent=1 // pred_check
      _
    $region11: #{tpu_custom_call.1} parent=1 // pred_check_branch
      %38 = sbr.rel (0) target = $region13
    $region12: #{tpu_custom_call.1} parent=1 // pred_region
      _
    $region13: #{tpu_custom_call.1} parent=1 // pred_fallthru
      _
    // Predicated region
    $region14: #{tpu_custom_call.1} parent=1 // pred_check
      _
    $region15: #{tpu_custom_call.1} parent=1 // pred_check_branch
      %40 = sbr.rel (0) target = $region17
    $region16: #{tpu_custom_call.1} parent=1 // pred_region
      %s42 = ssub.s32 2048, 2048
      %43 = vsyncadd [#allocation7], %s42
      %s44 = sshll.u32 [#allocation8], 4
      %s45 = int_to_ptr.vmem [resolvable:$true] %s44
      %50 = dma.hbm_to_vmem [thread:$0]  %s3, 2048, %s45, [#allocation7], 128, 128, 8
    $region17: #{tpu_custom_call.1} parent=1 // pred_fallthru
      _
    // Predicated region
    $region18: #{tpu_custom_call.1} parent=1 // pred_check
      _
    $region19: #{tpu_custom_call.1} parent=1 // pred_check_branch
      %52 = sbr.rel (0) target = $region21
    $region20: #{tpu_custom_call.1} parent=1 // pred_region
      _
    $region21: #{tpu_custom_call.1} parent=1 // pred_fallthru
      _
    // Predicated region
    $region22: #{tpu_custom_call.1} parent=1 // pred_check
      _
    $region23: #{tpu_custom_call.1} parent=1 // pred_check_branch
      %54 = sbr.rel (0) target = $region25
    $region24: #{tpu_custom_call.1} parent=1 // pred_region
      %55 = dma.done [#allocation4], 256
    $region25: #{tpu_custom_call.1} parent=1 // pred_fallthru
      _
    // Predicated region
    $region26: #{tpu_custom_call.1} parent=1 // pred_check
      _
    $region27: #{tpu_custom_call.1} parent=1 // pred_check_branch
      %57 = sbr.rel (0) target = $region29
    $region28: #{tpu_custom_call.1} parent=1 // pred_region
      %58 = dma.done [#allocation7], 512
    $region29: #{tpu_custom_call.1} parent=1 // pred_fallthru
      _
    // Predicated region
    $region30: #{tpu_custom_call.1} parent=1 // pred_check
      _
    $region31: #{tpu_custom_call.1} parent=1 // pred_check_branch
      %60 = sbr.rel (0) target = $region33
    $region32: #{tpu_custom_call.1} parent=1 // pred_region
      %61 = dma.done [#allocation7], 2048
    $region33: #{tpu_custom_call.1} parent=1 // pred_fallthru
      _
    %p62 = scmp.eq.s32.totalorder 0, 0
    // Predicated region
    $region34: #{tpu_custom_call.1} parent=1 // pred_check
      %p63 = pneg %p62
    $region35: #{tpu_custom_call.1} parent=1 // pred_check_branch
      %65 = sbr.rel (%p63) target = $region37
    $region36: #{tpu_custom_call.1} parent=1 // pred_region
      %66 = vst [vmem:[#allocation2] sm:$0xff] 0.0
      %67 = vst [vmem:[#allocation2 + $0x8] sm:$0xff] 0.0
    $region37: #{tpu_custom_call.1} parent=1 // pred_fallthru
      _
    %v68 = vld [vmem:[#allocation3] sm:$0xff]
    %v69 = vld [vmem:[#allocation3 + $0x8] sm:$0xff]
    %v70 = vld [vmem:[#allocation6] sm:$0xff]
    %v71 = vld [vmem:[#allocation6 + $0x8] sm:$0xff]
    %v72 = vld [vmem:[#allocation6 + $0x10] sm:$0xff]
    %v73 = vld [vmem:[#allocation6 + $0x18] sm:$0xff]
    %v74 = vld [vmem:[%s2] sm:$0x1]
    %v76 = vlaneseq
    %v77 = vshrl.u32 %v76, 7
    %v78 = vsub.s32 0, %v77
    %v79 = vrot.slane %v74, %v78
    %vm81 = vcmask 261120
    %v83 = vsel %vm81, %v68, 0
    %v86 = vsel %vm81, %v69, 0
    %88 = vmatprep.subr.mxu0 0.0
    %89 = vmatpush1.msra.mxu0 0.0
    %90 = vmatprep.subr.mxu0 0.0
    %91 = vmatpush1.msra.mxu0 0.0
    %92 = vmatprep.subr.mxu0 0.0
    %93 = vmatpush1.msra.mxu0 0.0
    %94 = vmatprep.subr.mxu0 0.0
    %95 = vmatpush1.msra.mxu0 0.0
    %96 = vmatprep.subr.mxu0 0.0
    %97 = vmatpush1.msra.mxu0 0.0
    %98 = vmatprep.subr.mxu0 0.0
    %99 = vmatpush1.msra.mxu0 0.0
    %100 = vmatprep.subr.mxu0 0.0
    %101 = vmatpush1.msra.mxu0 0.0
    %102 = vmatprep.subr.mxu0 0.0
    %103 = vmatpush1.msra.mxu0 0.0
    %104 = vmatprep.subr.mxu0 0.0
    %105 = vmatpush1.msra.mxu0 0.0
    %106 = vmatprep.subr.mxu0 0.0
    %107 = vmatpush1.msra.mxu0 0.0
    %108 = vmatprep.subr.mxu0 0.0
    %109 = vmatpush1.msra.mxu0 0.0
    %110 = vmatprep.subr.mxu0 0.0
    %111 = vmatpush1.msra.mxu0 0.0
    %112 = vmatprep.subr.mxu0 0.0
    %113 = vmatpush1.msra.mxu0 %v73
    %114 = vmatprep.subr.mxu0 0.0
    %115 = vmatpush1.msra.mxu0 %v72
    %116 = vmatprep.subr.mxu0 0.0
    %117 = vmatpush1.msra.mxu0 %v71
    %118 = vmatprep.subr.mxu0 0.0
    %119 = vmatpush1.msra.mxu0 %v70
    %120 = vmatprep.subr.mxu0 0.0
    %121 = vmatpush2.msra.mxu0 0.0
    %122 = vmatprep.subr.mxu0 0.0
    %123 = vmatpush2.msra.mxu0 0.0
    %124 = vmatprep.subr.mxu0 0.0
    %125 = vmatpush2.msra.mxu0 0.0
    %126 = vmatprep.subr.mxu0 0.0
    %127 = vmatpush2.msra.mxu0 0.0
    %128 = vmatprep.subr.mxu0 0.0
    %129 = vmatpush2.msra.mxu0 0.0
    %130 = vmatprep.subr.mxu0 0.0
    %131 = vmatpush2.msra.mxu0 0.0
    %132 = vmatprep.subr.mxu0 0.0
    %133 = vmatpush2.msra.mxu0 0.0
    %134 = vmatprep.subr.mxu0 0.0
    %135 = vmatpush2.msra.mxu0 0.0
    %136 = vmatprep.subr.mxu0 0.0
    %137 = vmatpush2.msra.mxu0 0.0
    %138 = vmatprep.subr.mxu0 0.0
    %139 = vmatpush2.msra.mxu0 0.0
    %140 = vmatprep.subr.mxu0 0.0
    %141 = vmatpush2.msra.mxu0 0.0
    %142 = vmatprep.subr.mxu0 0.0
    %143 = vmatpush2.msra.mxu0 0.0
    %144 = vmatprep.subr.mxu0 0.0
    %145 = vmatpush2.msra.mxu0 0.0
    %146 = vmatprep.subr.mxu0 0.0
    %147 = vmatpush2.msra.mxu0 0.0
    %148 = vmatprep.subr.mxu0 0.0
    %149 = vmatpush2.msra.mxu0 0.0
    %150 = vmatprep.subr.mxu0 0.0
    %151 = vmatpush2.msra.mxu0 0.0
    %152 = vmatprep.mubr.f32.mxu0 0.0
    %153 = vmatmul.mubr.f32.gmra.mxu0 %v83
    %v154 = vpop.f32.mrf.mxu0
    %v155 = vadd.f32 %v79, %v154
    %v156 = vpop.f32.mrf.mxu0
    %157 = vmatprep.mubr.f32.mxu0 0.0
    %158 = vmatmul.mubr.f32.gmra.mxu0 %v86
    %v159 = vpop.f32.mrf.mxu0
    %v160 = vadd.f32 %v79, %v159
    %v161 = vpop.f32.mrf.mxu0
    %162 = vdwg.mxu0
    %v163 = vmax.f32 %v155, 0.0
    %v164 = vmax.f32 %v160, 0.0
    %v165 = vld [vmem:[#allocation2] sm:$0xff]
    %v166 = vld [vmem:[#allocation2 + $0x8] sm:$0xff]
    %v167 = vld [vmem:[#allocation8] sm:$0xff]
    %v168 = vld [vmem:[#allocation8 + $0x8] sm:$0xff]
    %v169 = vld [vmem:[#allocation8 + $0x10] sm:$0xff]
    %v170 = vld [vmem:[#allocation8 + $0x18] sm:$0xff]
    %v171 = vld [vmem:[#allocation8 + $0x20] sm:$0xff]
    %v172 = vld [vmem:[#allocation8 + $0x28] sm:$0xff]
    %v173 = vld [vmem:[#allocation8 + $0x30] sm:$0xff]
    %v174 = vld [vmem:[#allocation8 + $0x38] sm:$0xff]
    %v175 = vld [vmem:[#allocation8 + $0x40] sm:$0xff]
    %v176 = vld [vmem:[#allocation8 + $0x48] sm:$0xff]
    %v177 = vld [vmem:[#allocation8 + $0x50] sm:$0xff]
    %v178 = vld [vmem:[#allocation8 + $0x58] sm:$0xff]
    %v179 = vld [vmem:[#allocation8 + $0x60] sm:$0xff]
    %v180 = vld [vmem:[#allocation8 + $0x68] sm:$0xff]
    %v181 = vld [vmem:[#allocation8 + $0x70] sm:$0xff]
    %v182 = vld [vmem:[#allocation8 + $0x78] sm:$0xff]
    %183 = vmatprep.subr.mxu0 0.0
    %184 = vmatpush1.msra.mxu0 %v182
    %185 = vmatprep.subr.mxu0 0.0
    %186 = vmatpush1.msra.mxu0 %v181
    %187 = vmatprep.subr.mxu0 0.0
    %188 = vmatpush1.msra.mxu0 %v180
    %189 = vmatprep.subr.mxu0 0.0
    %190 = vmatpush1.msra.mxu0 %v179
    %191 = vmatprep.subr.mxu0 0.0
    %192 = vmatpush1.msra.mxu0 %v178
    %193 = vmatprep.subr.mxu0 0.0
    %194 = vmatpush1.msra.mxu0 %v177
    %195 = vmatprep.subr.mxu0 0.0
    %196 = vmatpush1.msra.mxu0 %v176
    %197 = vmatprep.subr.mxu0 0.0
    %198 = vmatpush1.msra.mxu0 %v175
    %199 = vmatprep.subr.mxu0 0.0
    %200 = vmatpush1.msra.mxu0 %v174
    %201 = vmatprep.subr.mxu0 0.0
    %202 = vmatpush1.msra.mxu0 %v173
    %203 = vmatprep.subr.mxu0 0.0
    %204 = vmatpush1.msra.mxu0 %v172
    %205 = vmatprep.subr.mxu0 0.0
    %206 = vmatpush1.msra.mxu0 %v171
    %207 = vmatprep.subr.mxu0 0.0
    %208 = vmatpush1.msra.mxu0 %v170
    %209 = vmatprep.subr.mxu0 0.0
    %210 = vmatpush1.msra.mxu0 %v169
    %211 = vmatprep.subr.mxu0 0.0
    %212 = vmatpush1.msra.mxu0 %v168
    %213 = vmatprep.subr.mxu0 0.0
    %214 = vmatpush1.msra.mxu0 %v167
    %215 = vmatprep.subr.mxu0 0.0
    %216 = vmatpush2.msra.mxu0 0.0
    %217 = vmatprep.subr.mxu0 0.0
    %218 = vmatpush2.msra.mxu0 0.0
    %219 = vmatprep.subr.mxu0 0.0
    %220 = vmatpush2.msra.mxu0 0.0
    %221 = vmatprep.subr.mxu0 0.0
    %222 = vmatpush2.msra.mxu0 0.0
    %223 = vmatprep.subr.mxu0 0.0
    %224 = vmatpush2.msra.mxu0 0.0
    %225 = vmatprep.subr.mxu0 0.0
    %226 = vmatpush2.msra.mxu0 0.0
    %227 = vmatprep.subr.mxu0 0.0
    %228 = vmatpush2.msra.mxu0 0.0
    %229 = vmatprep.subr.mxu0 0.0
    %230 = vmatpush2.msra.mxu0 0.0
    %231 = vmatprep.subr.mxu0 0.0
    %232 = vmatpush2.msra.mxu0 0.0
    %233 = vmatprep.subr.mxu0 0.0
    %234 = vmatpush2.msra.mxu0 0.0
    %235 = vmatprep.subr.mxu0 0.0
    %236 = vmatpush2.msra.mxu0 0.0
    %237 = vmatprep.subr.mxu0 0.0
    %238 = vmatpush2.msra.mxu0 0.0
    %239 = vmatprep.subr.mxu0 0.0
    %240 = vmatpush2.msra.mxu0 0.0
    %241 = vmatprep.subr.mxu0 0.0
    %242 = vmatpush2.msra.mxu0 0.0
    %243 = vmatprep.subr.mxu0 0.0
    %244 = vmatpush2.msra.mxu0 0.0
    %245 = vmatprep.subr.mxu0 0.0
    %246 = vmatpush2.msra.mxu0 0.0
    %247 = vmatprep.mubr.f32.mxu0 0.0
    %248 = vmatmul.mubr.f32.gmra.mxu0 %v163
    %v249 = vpop.f32.mrf.mxu0
    %v250 = vadd.f32 0.0, %v249
    %v251 = vpop.f32.mrf.mxu0
    %252 = vmatprep.mubr.f32.mxu0 0.0
    %253 = vmatmul.mubr.f32.gmra.mxu0 %v164
    %v254 = vpop.f32.mrf.mxu0
    %v255 = vadd.f32 0.0, %v254
    %v256 = vpop.f32.mrf.mxu0
    %257 = vdwg.mxu0
    %v258 = vadd.f32 %v165, %v250
    %v259 = vadd.f32 %v166, %v255
    %260 = vst [vmem:[#allocation2] sm:$0xff] %v258
    %261 = vst [vmem:[#allocation2 + $0x8] sm:$0xff] %v259
    // Predicated region
    $region38: #{tpu_custom_call.1} parent=1 // pred_check
      %p262 = pneg %p62
    $region39: #{tpu_custom_call.1} parent=1 // pred_check_branch
      %264 = sbr.rel (%p262) target = $region41
    $region40: #{tpu_custom_call.1} parent=1 // pred_region
      %v265 = vld [vmem:[#allocation2] sm:$0xff]
      %v266 = vld [vmem:[#allocation2 + $0x8] sm:$0xff]
      %v267 = vld [vmem:[%s4] sm:$0x1]
      %v269 = vlaneseq
      %v270 = vshrl.u32 %v269, 7
      %v271 = vsub.s32 0, %v270
      %v272 = vrot.slane %v267, %v271
      %v274 = vadd.f32 %v265, %v272
      %v275 = vadd.f32 %v266, %v272
      %276 = vst [vmem:[#allocation9] sm:$0xff] %v274
      %277 = vst [vmem:[#allocation9 + $0x8] sm:$0xff] %v275
    $region41: #{tpu_custom_call.1} parent=1 // pred_fallthru
      _
    // Predicated region
    $region42: #{tpu_custom_call.1} parent=1 // pred_check
      _
    $region43: #{tpu_custom_call.1} parent=1 // pred_check_branch
      %279 = sbr.rel (0) target = $region45
    $region44: #{tpu_custom_call.1} parent=1 // pred_region
      %s281 = ssub.s32 256, 256
      %282 = vsyncadd [#allocation5], %s281
      %s283 = sshll.u32 [#allocation9], 4
      %s284 = int_to_ptr.vmem [resolvable:$true] %s283
      %289 = dma.vmem_to_hbm [thread:$0]  %s284, 256, %s5, [#allocation5], 128, 128, 8
    $region45: #{tpu_custom_call.1} parent=1 // pred_fallthru
      _
    // Predicated region
    $region46: #{tpu_custom_call.1} parent=1 // pred_check
      _
    $region47: #{tpu_custom_call.1} parent=1 // pred_check_branch
      %291 = sbr.rel (0) target = $region49
    $region48: #{tpu_custom_call.1} parent=1 // pred_region
      %292 = dma.done [#allocation5], 256
    $region49: #{tpu_custom_call.1} parent=1 // pred_fallthru
      _
    %293 = vsyncpa [#allocation4], 1
    %294 = vsyncpa [#allocation7], 1
    %295 = vsyncpa [#allocation5], 1

</llo_original>
